<compile_context>
chip_gen: v7x
topology: tpu7x:2x2x1
jax: 0.10.0
libtpu: 0.0.40
codegen_flags: <defaults>
</compile_context>

<pallas_src>
import functools

import numpy as np
import jax
import jax.numpy as jnp
from jax import lax
from jax.experimental import pallas as pl
from jax.experimental.pallas import tpu as pltpu


def qr_embedding_kernel(idx_ref, w_ref, out_ref, *, num_collisions, pack, emb_dim, n_q):
    # idx_ref : (rows_blk, pack) int32   -- block of flattened indices (row p*pack+j -> [p, j])
    # w_ref   : (Eq+Er, 2D)              -- block-diagonal [[wq, 0], [0, wr]] table (VMEM-resident)
    # out_ref : (rows_blk, pack*D)       -- lane-dense packed output block
    idx = idx_ref[...]                                        # (rows_blk, pack)
    c = int(num_collisions)

    if (c & (c - 1)) == 0:                                    # power of two: shift / mask
        shift = c.bit_length() - 1
        idx_q = idx >> shift                                  # arithmetic shift == floor div
        idx_r = idx & (c - 1)                                 # == Python/torch remainder
    else:
        idx_q = idx // c                                      # floor division (matches torch //)
        idx_r = jnp.remainder(idx, c)                         # matches torch.remainder

    n_tot = w_ref.shape[0]                                    # Eq + Er
    w = w_ref[...]
    # 1-row iota; the compare below broadcasts it against (rows_blk, 1) index columns.
    iota = lax.broadcasted_iota(jnp.int32, (1, n_tot), 1)

    parts = []
    for j in range(pack):                                     # static unroll, pack = 128 // D
        qj = idx_q[:, j:j + 1]                                # (rows_blk, 1)
        rj = idx_r[:, j:j + 1] + n_q
        two_hot = ((iota == qj) | (iota == rj)).astype(w.dtype)          # (rows_blk, Eq+Er)
        qr = jnp.dot(two_hot, w, preferred_element_type=jnp.float32)     # (rows_blk, 2D)
        parts.append(qr[:, :emb_dim] * qr[:, emb_dim:])                  # emb_q * emb_r (f32)
    # Single full-width (128-lane) store per block.
    out_ref[...] = jnp.concatenate(parts, axis=-1).astype(out_ref.dtype)


def qr_embedding(indices, weight_q, weight_r, num_collisions, *, row_block=None):
    """indices: int array of any shape; weight_q: (Eq, D); weight_r: (Er, D).
    Returns indices.shape + (D,) with out = weight_q[idx//c] * weight_r[idx%c]."""
    Eq, D = weight_q.shape
    Er, Dr = weight_r.shape
    assert D == Dr, "embedding dims must match for operation='mult'"

    w_dtype = jnp.promote_types(weight_q.dtype, weight_r.dtype)
    out_dtype = w_dtype                          # matches PyTorch: output dtype == weight dtype
    # Block-diagonal combined table: [[wq, 0], [0, wr]] of shape (Eq+Er, 2D).
    w_comb = jnp.zeros((Eq + Er, 2 * D), dtype=w_dtype)
    w_comb = w_comb.at[:Eq, :D].set(weight_q.astype(w_dtype))
    w_comb = w_comb.at[Eq:, D:].set(weight_r.astype(w_dtype))

    idx_flat = jnp.asarray(indices, jnp.int32).reshape(-1)
    L = int(idx_flat.shape[0])

    # Lane packing so the output block's last dim is a dense multiple of 128 lanes.
    if D < 128 and 128 % D == 0:
        pack = 128 // D
    else:
        pack = 1                                  # D >= 128 (or awkward D): last dim == D

    # Minimal padding: only up to a multiple of `pack` (<= pack-1 rows).  The partial final
    # grid block is handled by Pallas' masked writeback, so there is no pad-to-block copy.
    L_quant = pl.cdiv(L, pack) * pack
    if L_quant != L:
        idx_flat = jnp.pad(idx_flat, (0, L_quant - L))        # index 0 is always valid
    R = L_quant // pack                                        # packed rows
    idx_packed = idx_flat.reshape(R, pack)

    # ---- VMEM budget & tile selection (conservative across v5e/v6e/v7x) ----------------
    row_quantum = pack * 8                                     # sublane multiple of 8
    w_it = jnp.dtype(w_dtype).itemsize
    out_it = jnp.dtype(out_dtype).itemsize
    table_bytes = (Eq + Er) * 2 * D * w_it
    # Rough per-flattened-row VMEM cost: idx (2 buf) + out (2 buf) + two-hot + intermediates.
    per_row = 2 * 4 + 2 * D * out_it + (Eq + Er) * w_it + 8 * D * 4
    vmem_budget = 28 * 2 ** 20                                 # safe under v7x 64 MiB/TC
    rows_budget = vmem_budget - 2 * table_bytes - (2 << 20)
    if rows_budget < per_row * row_quantum:
        # TODO(synk): table too large for the VMEM-resident two-hot path; needs the
        # scalar-prefetch / DMA row-gather variant for weight_q.
        rows_budget = per_row * row_quantum
    if row_block is None:
        row_block = min(8192, int(rows_budget // per_row))     # 0.5-1 MiB output tiles
    row_block = max(row_quantum, (int(row_block) // row_quantum) * row_quantum)
    rows_blk = row_block // pack
    rows_blk = max(8, min(rows_blk, pl.cdiv(R, 8) * 8))        # don't over-allocate tiny inputs
    n_blocks = pl.cdiv(R, rows_blk)

    vmem_est = 2 * table_bytes + per_row * rows_blk * pack + (2 << 20)
    vmem_limit = int(min(64 * 2 ** 20, max(16 * 2 ** 20, int(vmem_est * 1.5))))

    kernel = functools.partial(
        qr_embedding_kernel,
        num_collisions=int(num_collisions), pack=pack, emb_dim=D, n_q=Eq)

    cost = pl.CostEstimate(
        flops=2 * L_quant * (Eq + Er) * 2 * D + L_quant * D,
        transcendentals=0,
        bytes_accessed=L_quant * D * out_it + table_bytes + L_quant * 4)

    def _call(single_buffer_tables):
        tbl_kwargs = {}
        if single_buffer_tables:
            # Constant index_map -> nothing to double-buffer; halve table VMEM.
            tbl_kwargs = dict(pipeline_mode=pl.Buffered(1))
        return pl.pallas_call(
            kernel,
            out_shape=jax.ShapeDtypeStruct((R, pack * D), out_dtype),
            grid_spec=pltpu.PrefetchScalarGridSpec(
                num_scalar_prefetch=0,
                grid=(n_blocks,),
                in_specs=[
                    # index block (lane-packed int32 rows)
                    pl.BlockSpec((rows_blk, pack), lambda i: (i, 0)),
                    # combined QR table, constant block index -> fetched once, kept resident
                    pl.BlockSpec((Eq + Er, 2 * D), lambda i: (0, 0), **tbl_kwargs),
                ],
                out_specs=pl.BlockSpec((rows_blk, pack * D), lambda i: (i, 0)),
            ),
            compiler_params=pltpu.CompilerParams(
                dimension_semantics=("parallel",),     # independent blocks -> megacore shardable
                vmem_limit_bytes=vmem_limit),
            cost_estimate=cost,
        )(idx_packed, w_comb)

    try:
        out_packed = _call(True)
    except Exception:       # pl.Buffered(1) unavailable/rejected on this version: double-buffer
        out_packed = _call(False)

    # Packed slab (R, pack*D) is row-major identical to (L_quant, D): free reshape.
    out_flat = out_packed.reshape(L_quant, D)
    if L_quant != L:
        # Rare tail case (< pack rows of padding): the slice is the only extra copy.
        out_flat = out_flat[:L]
    return out_flat.reshape(indices.shape + (D,))


if __name__ == "__main__":
    key = jax.random.PRNGKey(0)
    embedding_dim = 32

    def make_tables(k, num_categories, num_collisions, dtype=jnp.float32):
        num_emb_q = int(np.ceil(num_categories / num_collisions))
        num_emb_r = num_collisions
        kq, kr = jax.random.split(k)
        low = float(np.sqrt(1.0 / num_categories))
        wq = jax.random.uniform(kq, (num_emb_q, embedding_dim), jnp.float32, low, 1.0).astype(dtype)
        wr = jax.random.uniform(kr, (num_emb_r, embedding_dim), jnp.float32, low, 1.0).astype(dtype)
        return wq, wr

    # ---- Test 1: power-of-two collisions (shift/mask path), L % pack == 0, no padding ----
    num_categories, num_collisions = 64, 8
    k1, k2, key = jax.random.split(key, 3)
    wq, wr = make_tables(k1, num_categories, num_collisions)
    B, N = 2, 8
    idx = jax.random.randint(k2, (B, N), 0, num_categories, dtype=jnp.int32)
    out = jax.block_until_ready(qr_embedding(idx, wq, wr, num_collisions))
    ref = wq[idx // num_collisions] * wr[idx % num_collisions]
    np.testing.assert_allclose(np.asarray(out), np.asarray(ref), rtol=1e-6, atol=1e-6)
    assert out.shape == (B, N, embedding_dim) and out.dtype == wq.dtype

    # ---- Test 2: non-power-of-two collisions, multi-block grid with partial final block ----
    num_categories, num_collisions = 96, 6
    k1, k2, key = jax.random.split(key, 3)
    wq, wr = make_tables(k1, num_categories, num_collisions)
    B, N = 4, 40                                   # L=160 -> 40 packed rows -> 3 blocks of 16
    idx = jax.random.randint(k2, (B, N), 0, num_categories, dtype=jnp.int32)
    out = jax.block_until_ready(qr_embedding(idx, wq, wr, num_collisions, row_block=64))
    ref = wq[idx // num_collisions] * wr[idx % num_collisions]
    np.testing.assert_allclose(np.asarray(out), np.asarray(ref), rtol=1e-6, atol=1e-6)
    assert out.shape == (B, N, embedding_dim)

    # ---- Test 3: L not a multiple of pack -> minimal tail pad + depad slice path ----
    num_categories, num_collisions = 32, 4
    k1, k2, key = jax.random.split(key, 3)
    wq, wr = make_tables(k1, num_categories, num_collisions)
    B, N = 3, 7                                    # L=21, pack=4 -> padded to 24
    idx = jax.random.randint(k2, (B, N), 0, num_categories, dtype=jnp.int32)
    out = jax.block_until_ready(qr_embedding(idx, wq, wr, num_collisions))
    ref = wq[idx // num_collisions] * wr[idx % num_collisions]
    np.testing.assert_allclose(np.asarray(out), np.asarray(ref), rtol=1e-6, atol=1e-6)
    assert out.shape == (B, N, embedding_dim)

    # ---- Test 4: bf16 tables (v6e/v7x option) -> bf16 output, exact row selection ----
    num_categories, num_collisions = 64, 8
    k1, k2, key = jax.random.split(key, 3)
    wq, wr = make_tables(k1, num_categories, num_collisions, dtype=jnp.bfloat16)
    B, N = 2, 8
    idx = jax.random.randint(k2, (B, N), 0, num_categories, dtype=jnp.int32)
    out = jax.block_until_ready(qr_embedding(idx, wq, wr, num_collisions))
    ref = (wq[idx // num_collisions].astype(jnp.float32)
           * wr[idx % num_collisions].astype(jnp.float32)).astype(jnp.bfloat16)
    assert out.dtype == jnp.bfloat16
    np.testing.assert_allclose(np.asarray(out, dtype=np.float32),
                               np.asarray(ref, dtype=np.float32), rtol=1e-2, atol=1e-2)

    print("KERNEL_OK")
</pallas_src>

<mosaic_0001>
module attributes {stable_mosaic.version = 11 : i64} {
  func.func @qr_embedding_kernel(%arg0: i32, %arg1: memref<8x4xi32, #tpu.memory_space<vmem>>, %arg2: memref<16x64xf32, #tpu.memory_space<vmem>>, %arg3: memref<8x128xf32, #tpu.memory_space<vmem>>) attributes {dimension_semantics = [#tpu.dimension_semantics<parallel>], iteration_bounds = array<i64: 1>, scalar_prefetch = 0 : i64, scratch_operands = 0 : i64, tpu.core_type = #tpu.core_type<tc>, window_params = [{transform_indices = @transform_0, window_bounds = array<i64: 8, 4>}, {pipeline_mode = #tpu.pipeline_mode<synchronous>, transform_indices = @transform_1, window_bounds = array<i64: 16, 64>}, {transform_indices = @transform_2, window_bounds = array<i64: 8, 128>}]} {
    %c0 = arith.constant 0 : index
    %c0_0 = arith.constant 0 : index
    %0 = vector.load %arg1[%c0, %c0_0] : memref<8x4xi32, #tpu.memory_space<vmem>>, vector<8x4xi32>
    %c3_i32 = arith.constant 3 : i32
    %1 = vector.broadcast %c3_i32 : i32 to vector<8x4xi32>
    %2 = arith.shrsi %0, %1 : vector<8x4xi32>
    %c7_i32 = arith.constant 7 : i32
    %3 = vector.broadcast %c7_i32 : i32 to vector<8x4xi32>
    %4 = arith.andi %0, %3 : vector<8x4xi32>
    %c0_1 = arith.constant 0 : index
    %c0_2 = arith.constant 0 : index
    %5 = vector.load %arg2[%c0_1, %c0_2] : memref<16x64xf32, #tpu.memory_space<vmem>>, vector<16x64xf32>
    %6 = tpu.iota {dimensions = array<i32: 1>} : vector<1x16xi32>
    %7 = vector.extract_strided_slice %2 {offsets = [0, 0], sizes = [8, 1], strides = [1, 1]} : vector<8x4xi32> to vector<8x1xi32>
    %8 = vector.extract_strided_slice %4 {offsets = [0, 0], sizes = [8, 1], strides = [1, 1]} : vector<8x4xi32> to vector<8x1xi32>
    %c8_i32 = arith.constant 8 : i32
    %9 = vector.broadcast %c8_i32 : i32 to vector<8x1xi32>
    %10 = arith.addi %8, %9 : vector<8x1xi32>
    %11 = vector.broadcast %6 : vector<1x16xi32> to vector<8x16xi32>
    %12 = vector.broadcast %7 : vector<8x1xi32> to vector<8x16xi32>
    %13 = arith.cmpi eq, %11, %12 : vector<8x16xi32>
    %14 = vector.broadcast %6 : vector<1x16xi32> to vector<8x16xi32>
    %15 = vector.broadcast %10 : vector<8x1xi32> to vector<8x16xi32>
    %16 = arith.cmpi eq, %14, %15 : vector<8x16xi32>
    %17 = arith.ori %13, %16 : vector<8x16xi1>
    %18 = arith.extui %17 : vector<8x16xi1> to vector<8x16xi32>
    %19 = arith.sitofp %18 : vector<8x16xi32> to vector<8x16xf32>
    %cst = arith.constant dense<0.000000e+00> : vector<8x64xf32>
    %20 = tpu.matmul %19, %5, %cst {dimension_numbers = #tpu.dot_dimension_numbers<[1], [0], [0], [1], [0, 0, 1, 1], [], []>} : vector<8x16xf32>, vector<16x64xf32>, vector<8x64xf32> -> vector<8x64xf32>
    %21 = vector.extract_strided_slice %20 {offsets = [0, 0], sizes = [8, 32], strides = [1, 1]} : vector<8x64xf32> to vector<8x32xf32>
    %22 = vector.extract_strided_slice %20 {offsets = [0, 32], sizes = [8, 32], strides = [1, 1]} : vector<8x64xf32> to vector<8x32xf32>
    %23 = arith.mulf %21, %22 : vector<8x32xf32>
    %24 = vector.extract_strided_slice %2 {offsets = [0, 1], sizes = [8, 1], strides = [1, 1]} : vector<8x4xi32> to vector<8x1xi32>
    %25 = vector.extract_strided_slice %4 {offsets = [0, 1], sizes = [8, 1], strides = [1, 1]} : vector<8x4xi32> to vector<8x1xi32>
    %c8_i32_3 = arith.constant 8 : i32
    %26 = vector.broadcast %c8_i32_3 : i32 to vector<8x1xi32>
    %27 = arith.addi %25, %26 : vector<8x1xi32>
    %28 = vector.broadcast %6 : vector<1x16xi32> to vector<8x16xi32>
    %29 = vector.broadcast %24 : vector<8x1xi32> to vector<8x16xi32>
    %30 = arith.cmpi eq, %28, %29 : vector<8x16xi32>
    %31 = vector.broadcast %6 : vector<1x16xi32> to vector<8x16xi32>
    %32 = vector.broadcast %27 : vector<8x1xi32> to vector<8x16xi32>
    %33 = arith.cmpi eq, %31, %32 : vector<8x16xi32>
    %34 = arith.ori %30, %33 : vector<8x16xi1>
    %35 = arith.extui %34 : vector<8x16xi1> to vector<8x16xi32>
    %36 = arith.sitofp %35 : vector<8x16xi32> to vector<8x16xf32>
    %cst_4 = arith.constant dense<0.000000e+00> : vector<8x64xf32>
    %37 = tpu.matmul %36, %5, %cst_4 {dimension_numbers = #tpu.dot_dimension_numbers<[1], [0], [0], [1], [0, 0, 1, 1], [], []>} : vector<8x16xf32>, vector<16x64xf32>, vector<8x64xf32> -> vector<8x64xf32>
    %38 = vector.extract_strided_slice %37 {offsets = [0, 0], sizes = [8, 32], strides = [1, 1]} : vector<8x64xf32> to vector<8x32xf32>
    %39 = vector.extract_strided_slice %37 {offsets = [0, 32], sizes = [8, 32], strides = [1, 1]} : vector<8x64xf32> to vector<8x32xf32>
    %40 = arith.mulf %38, %39 : vector<8x32xf32>
    %41 = vector.extract_strided_slice %2 {offsets = [0, 2], sizes = [8, 1], strides = [1, 1]} : vector<8x4xi32> to vector<8x1xi32>
    %42 = vector.extract_strided_slice %4 {offsets = [0, 2], sizes = [8, 1], strides = [1, 1]} : vector<8x4xi32> to vector<8x1xi32>
    %c8_i32_5 = arith.constant 8 : i32
    %43 = vector.broadcast %c8_i32_5 : i32 to vector<8x1xi32>
    %44 = arith.addi %42, %43 : vector<8x1xi32>
    %45 = vector.broadcast %6 : vector<1x16xi32> to vector<8x16xi32>
    %46 = vector.broadcast %41 : vector<8x1xi32> to vector<8x16xi32>
    %47 = arith.cmpi eq, %45, %46 : vector<8x16xi32>
    %48 = vector.broadcast %6 : vector<1x16xi32> to vector<8x16xi32>
    %49 = vector.broadcast %44 : vector<8x1xi32> to vector<8x16xi32>
    %50 = arith.cmpi eq, %48, %49 : vector<8x16xi32>
    %51 = arith.ori %47, %50 : vector<8x16xi1>
    %52 = arith.extui %51 : vector<8x16xi1> to vector<8x16xi32>
    %53 = arith.sitofp %52 : vector<8x16xi32> to vector<8x16xf32>
    %cst_6 = arith.constant dense<0.000000e+00> : vector<8x64xf32>
    %54 = tpu.matmul %53, %5, %cst_6 {dimension_numbers = #tpu.dot_dimension_numbers<[1], [0], [0], [1], [0, 0, 1, 1], [], []>} : vector<8x16xf32>, vector<16x64xf32>, vector<8x64xf32> -> vector<8x64xf32>
    %55 = vector.extract_strided_slice %54 {offsets = [0, 0], sizes = [8, 32], strides = [1, 1]} : vector<8x64xf32> to vector<8x32xf32>
    %56 = vector.extract_strided_slice %54 {offsets = [0, 32], sizes = [8, 32], strides = [1, 1]} : vector<8x64xf32> to vector<8x32xf32>
    %57 = arith.mulf %55, %56 : vector<8x32xf32>
    %58 = vector.extract_strided_slice %2 {offsets = [0, 3], sizes = [8, 1], strides = [1, 1]} : vector<8x4xi32> to vector<8x1xi32>
    %59 = vector.extract_strided_slice %4 {offsets = [0, 3], sizes = [8, 1], strides = [1, 1]} : vector<8x4xi32> to vector<8x1xi32>
    %c8_i32_7 = arith.constant 8 : i32
    %60 = vector.broadcast %c8_i32_7 : i32 to vector<8x1xi32>
    %61 = arith.addi %59, %60 : vector<8x1xi32>
    %62 = vector.broadcast %6 : vector<1x16xi32> to vector<8x16xi32>
    %63 = vector.broadcast %58 : vector<8x1xi32> to vector<8x16xi32>
    %64 = arith.cmpi eq, %62, %63 : vector<8x16xi32>
    %65 = vector.broadcast %6 : vector<1x16xi32> to vector<8x16xi32>
    %66 = vector.broadcast %61 : vector<8x1xi32> to vector<8x16xi32>
    %67 = arith.cmpi eq, %65, %66 : vector<8x16xi32>
    %68 = arith.ori %64, %67 : vector<8x16xi1>
    %69 = arith.extui %68 : vector<8x16xi1> to vector<8x16xi32>
    %70 = arith.sitofp %69 : vector<8x16xi32> to vector<8x16xf32>
    %cst_8 = arith.constant dense<0.000000e+00> : vector<8x64xf32>
    %71 = tpu.matmul %70, %5, %cst_8 {dimension_numbers = #tpu.dot_dimension_numbers<[1], [0], [0], [1], [0, 0, 1, 1], [], []>} : vector<8x16xf32>, vector<16x64xf32>, vector<8x64xf32> -> vector<8x64xf32>
    %72 = vector.extract_strided_slice %71 {offsets = [0, 0], sizes = [8, 32], strides = [1, 1]} : vector<8x64xf32> to vector<8x32xf32>
    %73 = vector.extract_strided_slice %71 {offsets = [0, 32], sizes = [8, 32], strides = [1, 1]} : vector<8x64xf32> to vector<8x32xf32>
    %74 = arith.mulf %72, %73 : vector<8x32xf32>
    %75 = tpu.concatenate %23, %40, %57, %74 in 1 : vector<8x32xf32>, vector<8x32xf32>, vector<8x32xf32>, vector<8x32xf32> -> vector<8x128xf32>
    %c0_9 = arith.constant 0 : index
    %c0_10 = arith.constant 0 : index
    %76 = vector.load %arg3[%c0_9, %c0_10] : memref<8x128xf32, #tpu.memory_space<vmem>>, vector<8x128xf32>
    tpu.vector_store %arg3[%c0_9, %c0_10], %75 {strides = array<i32>} : memref<8x128xf32, #tpu.memory_space<vmem>>, vector<8x128xf32>,
    return
  }
  func.func @transform_0(%arg0: i32) -> (i32, i32) {
    %c0_i32 = arith.constant 0 : i32
    %c0_i32_0 = arith.constant 0 : i32
    return %arg0, %c0_i32 : i32, i32
  }
  func.func @transform_1(%arg0: i32) -> (i32, i32) {
    %c0_i32 = arith.constant 0 : i32
    %c0_i32_0 = arith.constant 0 : i32
    %c0_i32_1 = arith.constant 0 : i32
    return %c0_i32, %c0_i32_0 : i32, i32
  }
  func.func @transform_2(%arg0: i32) -> (i32, i32) {
    %c0_i32 = arith.constant 0 : i32
    %c0_i32_0 = arith.constant 0 : i32
    return %arg0, %c0_i32 : i32, i32
  }
}

module attributes {stable_mosaic.version = 11 : i64} {
  func.func @qr_embedding_kernel(%arg0: i32, %arg1: memref<8x4xi32, #tpu.memory_space<vmem>>, %arg2: memref<16x64xf32, #tpu.memory_space<vmem>>, %arg3: memref<8x128xf32, #tpu.memory_space<vmem>>) attributes {dimension_semantics = [#tpu.dimension_semantics<parallel>], iteration_bounds = array<i64: 1>, scalar_prefetch = 0 : i64, scratch_operands = 0 : i64, tpu.core_type = #tpu.core_type<tc>, window_params = [{transform_indices = @transform_0, window_bounds = array<i64: 8, 4>}, {pipeline_mode = #tpu.pipeline_mode<synchronous>, transform_indices = @transform_1, window_bounds = array<i64: 16, 64>}, {transform_indices = @transform_2, window_bounds = array<i64: 8, 128>}]} {
    %c0 = arith.constant 0 : index
    %c0_0 = arith.constant 0 : index
    %0 = vector.load %arg1[%c0, %c0_0] : memref<8x4xi32, #tpu.memory_space<vmem>>, vector<8x4xi32>
    %c3_i32 = arith.constant 3 : i32
    %1 = vector.broadcast %c3_i32 : i32 to vector<8x4xi32>
    %2 = arith.shrsi %0, %1 : vector<8x4xi32>
    %c7_i32 = arith.constant 7 : i32
    %3 = vector.broadcast %c7_i32 : i32 to vector<8x4xi32>
    %4 = arith.andi %0, %3 : vector<8x4xi32>
    %c0_1 = arith.constant 0 : index
    %c0_2 = arith.constant 0 : index
    %5 = vector.load %arg2[%c0_1, %c0_2] : memref<16x64xf32, #tpu.memory_space<vmem>>, vector<16x64xf32>
    %6 = tpu.iota {dimensions = array<i32: 1>} : vector<1x16xi32>
    %7 = vector.extract_strided_slice %2 {offsets = [0, 0], sizes = [8, 1], strides = [1, 1]} : vector<8x4xi32> to vector<8x1xi32>
    %8 = vector.extract_strided_slice %4 {offsets = [0, 0], sizes = [8, 1], strides = [1, 1]} : vector<8x4xi32> to vector<8x1xi32>
    %c8_i32 = arith.constant 8 : i32
    %9 = vector.broadcast %c8_i32 : i32 to vector<8x1xi32>
    %10 = arith.addi %8, %9 : vector<8x1xi32>
    %11 = vector.broadcast %6 : vector<1x16xi32> to vector<8x16xi32>
    %12 = vector.broadcast %7 : vector<8x1xi32> to vector<8x16xi32>
    %13 = arith.cmpi eq, %11, %12 : vector<8x16xi32>
    %14 = vector.broadcast %6 : vector<1x16xi32> to vector<8x16xi32>
    %15 = vector.broadcast %10 : vector<8x1xi32> to vector<8x16xi32>
    %16 = arith.cmpi eq, %14, %15 : vector<8x16xi32>
    %17 = arith.ori %13, %16 : vector<8x16xi1>
    %18 = arith.extui %17 : vector<8x16xi1> to vector<8x16xi32>
    %19 = arith.sitofp %18 : vector<8x16xi32> to vector<8x16xf32>
    %cst = arith.constant dense<0.000000e+00> : vector<8x64xf32>
    %20 = tpu.matmul %19, %5, %cst {dimension_numbers = #tpu.dot_dimension_numbers<[1], [0], [0], [1], [0, 0, 1, 1], [], []>} : vector<8x16xf32>, vector<16x64xf32>, vector<8x64xf32> -> vector<8x64xf32>
    %21 = vector.extract_strided_slice %20 {offsets = [0, 0], sizes = [8, 32], strides = [1, 1]} : vector<8x64xf32> to vector<8x32xf32>
    %22 = vector.extract_strided_slice %20 {offsets = [0, 32], sizes = [8, 32], strides = [1, 1]} : vector<8x64xf32> to vector<8x32xf32>
    %23 = arith.mulf %21, %22 : vector<8x32xf32>
    %24 = vector.extract_strided_slice %2 {offsets = [0, 1], sizes = [8, 1], strides = [1, 1]} : vector<8x4xi32> to vector<8x1xi32>
    %25 = vector.extract_strided_slice %4 {offsets = [0, 1], sizes = [8, 1], strides = [1, 1]} : vector<8x4xi32> to vector<8x1xi32>
    %c8_i32_3 = arith.constant 8 : i32
    %26 = vector.broadcast %c8_i32_3 : i32 to vector<8x1xi32>
    %27 = arith.addi %25, %26 : vector<8x1xi32>
    %28 = vector.broadcast %6 : vector<1x16xi32> to vector<8x16xi32>
    %29 = vector.broadcast %24 : vector<8x1xi32> to vector<8x16xi32>
    %30 = arith.cmpi eq, %28, %29 : vector<8x16xi32>
    %31 = vector.broadcast %6 : vector<1x16xi32> to vector<8x16xi32>
    %32 = vector.broadcast %27 : vector<8x1xi32> to vector<8x16xi32>
    %33 = arith.cmpi eq, %31, %32 : vector<8x16xi32>
    %34 = arith.ori %30, %33 : vector<8x16xi1>
    %35 = arith.extui %34 : vector<8x16xi1> to vector<8x16xi32>
    %36 = arith.sitofp %35 : vector<8x16xi32> to vector<8x16xf32>
    %cst_4 = arith.constant dense<0.000000e+00> : vector<8x64xf32>
    %37 = tpu.matmul %36, %5, %cst_4 {dimension_numbers = #tpu.dot_dimension_numbers<[1], [0], [0], [1], [0, 0, 1, 1], [], []>} : vector<8x16xf32>, vector<16x64xf32>, vector<8x64xf32> -> vector<8x64xf32>
    %38 = vector.extract_strided_slice %37 {offsets = [0, 0], sizes = [8, 32], strides = [1, 1]} : vector<8x64xf32> to vector<8x32xf32>
    %39 = vector.extract_strided_slice %37 {offsets = [0, 32], sizes = [8, 32], strides = [1, 1]} : vector<8x64xf32> to vector<8x32xf32>
    %40 = arith.mulf %38, %39 : vector<8x32xf32>
    %41 = vector.extract_strided_slice %2 {offsets = [0, 2], sizes = [8, 1], strides = [1, 1]} : vector<8x4xi32> to vector<8x1xi32>
    %42 = vector.extract_strided_slice %4 {offsets = [0, 2], sizes = [8, 1], strides = [1, 1]} : vector<8x4xi32> to vector<8x1xi32>
    %c8_i32_5 = arith.constant 8 : i32
    %43 = vector.broadcast %c8_i32_5 : i32 to vector<8x1xi32>
    %44 = arith.addi %42, %43 : vector<8x1xi32>
    %45 = vector.broadcast %6 : vector<1x16xi32> to vector<8x16xi32>
    %46 = vector.broadcast %41 : vector<8x1xi32> to vector<8x16xi32>
    %47 = arith.cmpi eq, %45, %46 : vector<8x16xi32>
    %48 = vector.broadcast %6 : vector<1x16xi32> to vector<8x16xi32>
    %49 = vector.broadcast %44 : vector<8x1xi32> to vector<8x16xi32>
    %50 = arith.cmpi eq, %48, %49 : vector<8x16xi32>
    %51 = arith.ori %47, %50 : vector<8x16xi1>
    %52 = arith.extui %51 : vector<8x16xi1> to vector<8x16xi32>
    %53 = arith.sitofp %52 : vector<8x16xi32> to vector<8x16xf32>
    %cst_6 = arith.constant dense<0.000000e+00> : vector<8x64xf32>
    %54 = tpu.matmul %53, %5, %cst_6 {dimension_numbers = #tpu.dot_dimension_numbers<[1], [0], [0], [1], [0, 0, 1, 1], [], []>} : vector<8x16xf32>, vector<16x64xf32>, vector<8x64xf32> -> vector<8x64xf32>
    %55 = vector.extract_strided_slice %54 {offsets = [0, 0], sizes = [8, 32], strides = [1, 1]} : vector<8x64xf32> to vector<8x32xf32>
    %56 = vector.extract_strided_slice %54 {offsets = [0, 32], sizes = [8, 32], strides = [1, 1]} : vector<8x64xf32> to vector<8x32xf32>
    %57 = arith.mulf %55, %56 : vector<8x32xf32>
    %58 = vector.extract_strided_slice %2 {offsets = [0, 3], sizes = [8, 1], strides = [1, 1]} : vector<8x4xi32> to vector<8x1xi32>
    %59 = vector.extract_strided_slice %4 {offsets = [0, 3], sizes = [8, 1], strides = [1, 1]} : vector<8x4xi32> to vector<8x1xi32>
    %c8_i32_7 = arith.constant 8 : i32
    %60 = vector.broadcast %c8_i32_7 : i32 to vector<8x1xi32>
    %61 = arith.addi %59, %60 : vector<8x1xi32>
    %62 = vector.broadcast %6 : vector<1x16xi32> to vector<8x16xi32>
    %63 = vector.broadcast %58 : vector<8x1xi32> to vector<8x16xi32>
    %64 = arith.cmpi eq, %62, %63 : vector<8x16xi32>
    %65 = vector.broadcast %6 : vector<1x16xi32> to vector<8x16xi32>
    %66 = vector.broadcast %61 : vector<8x1xi32> to vector<8x16xi32>
    %67 = arith.cmpi eq, %65, %66 : vector<8x16xi32>
    %68 = arith.ori %64, %67 : vector<8x16xi1>
    %69 = arith.extui %68 : vector<8x16xi1> to vector<8x16xi32>
    %70 = arith.sitofp %69 : vector<8x16xi32> to vector<8x16xf32>
    %cst_8 = arith.constant dense<0.000000e+00> : vector<8x64xf32>
    %71 = tpu.matmul %70, %5, %cst_8 {dimension_numbers = #tpu.dot_dimension_numbers<[1], [0], [0], [1], [0, 0, 1, 1], [], []>} : vector<8x16xf32>, vector<16x64xf32>, vector<8x64xf32> -> vector<8x64xf32>
    %72 = vector.extract_strided_slice %71 {offsets = [0, 0], sizes = [8, 32], strides = [1, 1]} : vector<8x64xf32> to vector<8x32xf32>
    %73 = vector.extract_strided_slice %71 {offsets = [0, 32], sizes = [8, 32], strides = [1, 1]} : vector<8x64xf32> to vector<8x32xf32>
    %74 = arith.mulf %72, %73 : vector<8x32xf32>
    %75 = tpu.concatenate %23, %40, %57, %74 in 1 : vector<8x32xf32>, vector<8x32xf32>, vector<8x32xf32>, vector<8x32xf32> -> vector<8x128xf32>
    %c0_9 = arith.constant 0 : index
    %c0_10 = arith.constant 0 : index
    %76 = vector.load %arg3[%c0_9, %c0_10] : memref<8x128xf32, #tpu.memory_space<vmem>>, vector<8x128xf32>
    tpu.vector_store %arg3[%c0_9, %c0_10], %75 {strides = array<i32>} : memref<8x128xf32, #tpu.memory_space<vmem>>, vector<8x128xf32>,
    return
  }
  func.func @transform_0(%arg0: i32) -> (i32, i32) {
    %c0_i32 = arith.constant 0 : i32
    %c0_i32_0 = arith.constant 0 : i32
    return %arg0, %c0_i32 : i32, i32
  }
  func.func @transform_1(%arg0: i32) -> (i32, i32) {
    %c0_i32 = arith.constant 0 : i32
    %c0_i32_0 = arith.constant 0 : i32
    %c0_i32_1 = arith.constant 0 : i32
    return %c0_i32, %c0_i32_0 : i32, i32
  }
  func.func @transform_2(%arg0: i32) -> (i32, i32) {
    %c0_i32 = arith.constant 0 : i32
    %c0_i32_0 = arith.constant 0 : i32
    return %arg0, %c0_i32 : i32, i32
  }
}

</mosaic_0001>

<llo_original>
// kernel: tpu_custom_call.1
$region0: #{tpu_custom_call.1}
  #allocation0 [shape = 'u32[]', space=smem, size = 0x4, offset = 0x4, fixed_abs, tag = 'smem constant byte address 0x4 - core index']
  #allocation1 [shape = 'u32[144,128]{1,0:T(1,128)}', space=vmem, size = 0x12000, scoped, tag = 'internal scratch']
  %s0 = inlined_call_operand.hbm [shape: s32[4,4], index: 0, kind: input, shape index: {}]
  %s1 = inlined_call_operand.hbm [shape: f32[16,64], index: 1, kind: input, shape index: {}]
  %s2 = inlined_call_operand.hbm [shape: f32[4,128], index: 2, kind: output, shape index: {}]
  %s3 = sld [smem:[#allocation0]]
  $region26: #{tpu_custom_call.1} parent=0
    _
  %s5 = ssub.s32 1, %s3
  %s6 = scalar_select 0, %s5, %s3
  $region1: #{tpu_custom_call.1} parent=0
    #allocation2 [shape = 'u8[4096]{0}', space=vmem, size = 0x1000, scoped, tag = 'input window, operand 0, single buffered']
    #allocation3 [shape = 's32[1]{0}', space=sflag, size = 0x4, scoped, tag = 'scoped memory for tpu_custom_call.1']
    #allocation4 [shape = 's32[1]{0}', space=sflag, size = 0x4, scoped, tag = 'scoped memory for tpu_custom_call.1']
    #allocation5 [shape = 'u8[8192]{0}', space=vmem, size = 0x2000, scoped, tag = 'input window, operand 1, single buffered']
    #allocation6 [shape = 's32[1]{0}', space=sflag, size = 0x4, scoped, tag = 'scoped memory for tpu_custom_call.1']
    #allocation7 [shape = 'u8[4096]{0}', space=vmem, size = 0x1000, scoped, tag = 'output window, operand 0, single buffered']
    %7 = vsyncpa [#allocation3], 0
    %8 = vsyncpa [#allocation6], 0
    %9 = vsyncpa [#allocation4], 0
    // Predicated region
    $region2: #{tpu_custom_call.1} parent=1 // pred_check
      _
    $region3: #{tpu_custom_call.1} parent=1 // pred_check_branch
      %11 = sbr.rel (0) target = $region5
    $region4: #{tpu_custom_call.1} parent=1 // pred_region
      %s13 = ssub.s32 128, 64
      %14 = vsyncadd [#allocation3], %s13
      %s15 = sshll.u32 [#allocation2], 4
      %s16 = int_to_ptr.vmem [resolvable:$true] %s15
      %21 = dma.hbm_to_vmem [thread:$0]  %s0, 64, %s16, [#allocation3], 64, 64, 4
    $region5: #{tpu_custom_call.1} parent=1 // pred_fallthru
      _
    // Predicated region
    $region6: #{tpu_custom_call.1} parent=1 // pred_check
      _
    $region7: #{tpu_custom_call.1} parent=1 // pred_check_branch
      %23 = sbr.rel (0) target = $region9
    $region8: #{tpu_custom_call.1} parent=1 // pred_region
      %s25 = ssub.s32 256, 256
      %26 = vsyncadd [#allocation6], %s25
      %s27 = sshll.u32 [#allocation5], 4
      %s28 = int_to_ptr.vmem [resolvable:$true] %s27
      %33 = dma.hbm_to_vmem [thread:$0]  %s1, 256, %s28, [#allocation6], 128, 128, 8
    $region9: #{tpu_custom_call.1} parent=1 // pred_fallthru
      _
    // Predicated region
    $region10: #{tpu_custom_call.1} parent=1 // pred_check
      _
    $region11: #{tpu_custom_call.1} parent=1 // pred_check_branch
      %35 = sbr.rel (0) target = $region13
    $region12: #{tpu_custom_call.1} parent=1 // pred_region
      %36 = dma.done [#allocation3], 128
    $region13: #{tpu_custom_call.1} parent=1 // pred_fallthru
      _
    // Predicated region
    $region14: #{tpu_custom_call.1} parent=1 // pred_check
      _
    $region15: #{tpu_custom_call.1} parent=1 // pred_check_branch
      %38 = sbr.rel (0) target = $region17
    $region16: #{tpu_custom_call.1} parent=1 // pred_region
      %39 = dma.done [#allocation6], 256
    $region17: #{tpu_custom_call.1} parent=1 // pred_fallthru
      _
    %v40 = vld [vmem:[#allocation2] sm:$0xff]
    %v41 = vshra.s32 %v40, 3
    %v42 = vand.u32 %v40, 7
    %v43 = vld [vmem:[#allocation5] sm:$0xff]
    %v44 = vld [vmem:[#allocation5 + $0x8] sm:$0xff]
    %v45 = vlaneseq
    %v46 = vand.u32 %v45, 127
    %v47 = vadd.s32 %v42, 8
    %48 = vset.pattern.permute.xlu0 0
    %49 = vperm.xlu0 %48, %v41
    %v50 = vpop.permute.xlu0 %49
    %vm51 = vcmp.eq.s32.totalorder %v46, %v50
    %52 = vset.pattern.permute.xlu0 0
    %53 = vperm.xlu0 %52, %v47
    %v54 = vpop.permute.xlu0 %53
    %vm55 = vcmp.eq.s32.totalorder %v46, %v54
    %vm56 = vmor %vm51, %vm55
    %v57 = vsel %vm56, 1, 0
    %v58 = vcvt.s32.f32 %v57
    %vm59 = vcmask 130048
    %v61 = vsel %vm59, %v58, 0
    %63 = vmatprep.subr.mxu0 0.0
    %64 = vmatpush1.msra.mxu0 %v43
    %65 = vmatprep.subr.mxu0 0.0
    %66 = vmatpush1.msra.mxu0 %v44
    %67 = vmatprep.subr.mxu0 0.0
    %68 = vmatpush1.msra.mxu0 0.0
    %69 = vmatprep.subr.mxu0 0.0
    %70 = vmatpush1.msra.mxu0 0.0
    %71 = vmatprep.subr.mxu0 0.0
    %72 = vmatpush1.msra.mxu0 0.0
    %73 = vmatprep.subr.mxu0 0.0
    %74 = vmatpush1.msra.mxu0 0.0
    %75 = vmatprep.subr.mxu0 0.0
    %76 = vmatpush1.msra.mxu0 0.0
    %77 = vmatprep.subr.mxu0 0.0
    %78 = vmatpush1.msra.mxu0 0.0
    %79 = vmatprep.subr.mxu0 0.0
    %80 = vmatpush1.msra.mxu0 0.0
    %81 = vmatprep.subr.mxu0 0.0
    %82 = vmatpush1.msra.mxu0 0.0
    %83 = vmatprep.subr.mxu0 0.0
    %84 = vmatpush1.msra.mxu0 0.0
    %85 = vmatprep.subr.mxu0 0.0
    %86 = vmatpush1.msra.mxu0 0.0
    %87 = vmatprep.subr.mxu0 0.0
    %88 = vmatpush1.msra.mxu0 0.0
    %89 = vmatprep.subr.mxu0 0.0
    %90 = vmatpush1.msra.mxu0 0.0
    %91 = vmatprep.subr.mxu0 0.0
    %92 = vmatpush1.msra.mxu0 0.0
    %93 = vmatprep.subr.mxu0 0.0
    %94 = vmatpush1.msra.mxu0 0.0
    %95 = vmatprep.subr.mxu0 0.0
    %96 = vmatpush1.msra.mxu0 0.0
    %97 = vmatprep.subr.mxu0 0.0
    %98 = vmatpush1.msra.mxu0 0.0
    %99 = vmatprep.subr.mxu0 0.0
    %100 = vmatpush1.msra.mxu0 0.0
    %101 = vmatprep.subr.mxu0 0.0
    %102 = vmatpush1.msra.mxu0 0.0
    %103 = vmatprep.subr.mxu0 0.0
    %104 = vmatpush1.msra.mxu0 0.0
    %105 = vmatprep.subr.mxu0 0.0
    %106 = vmatpush1.msra.mxu0 0.0
    %107 = vmatprep.subr.mxu0 0.0
    %108 = vmatpush1.msra.mxu0 0.0
    %109 = vmatprep.subr.mxu0 0.0
    %110 = vmatpush1.msra.mxu0 0.0
    %111 = vmatprep.subr.mxu0 0.0
    %112 = vmatpush1.msra.mxu0 0.0
    %113 = vmatprep.subr.mxu0 0.0
    %114 = vmatpush1.msra.mxu0 0.0
    %115 = vmatprep.subr.mxu0 0.0
    %116 = vmatpush1.msra.mxu0 0.0
    %117 = vmatprep.subr.mxu0 0.0
    %118 = vmatpush1.msra.mxu0 0.0
    %119 = vmatprep.subr.mxu0 0.0
    %120 = vmatpush1.msra.mxu0 0.0
    %121 = vmatprep.subr.mxu0 0.0
    %122 = vmatpush1.msra.mxu0 0.0
    %123 = vmatprep.subr.mxu0 0.0
    %124 = vmatpush1.msra.mxu0 0.0
    %125 = vmatprep.subr.mxu0 0.0
    %126 = vmatpush1.msra.mxu0 0.0
    %127 = vmatprep.mubr.f32.mxu0 0.0
    %128 = vmatmul.mubr.f32.gmra.mrb[0].mxu0 %v61
    %v129 = vpop.f32.mrb[0].mxu0
    %v130 = vadd.f32 0.0, %v129
    %v131 = vpop.f32.mrb[0].mxu0
    %132 = vdwg.mxu0
    %134 = vrot.lane.b32.xlu0 %v130, 96
    %v135 = vpop.permute.xlu0 %134
    %v137 = vmul.f32 %v130, %v135
    %138 = vset.pattern.permute.xlu0 1
    %139 = vperm.xlu0 %138, %v41
    %v140 = vpop.permute.xlu0 %139
    %vm141 = vcmp.eq.s32.totalorder %v46, %v140
    %142 = vset.pattern.permute.xlu0 1
    %143 = vperm.xlu0 %142, %v47
    %v144 = vpop.permute.xlu0 %143
    %vm145 = vcmp.eq.s32.totalorder %v46, %v144
    %vm146 = vmor %vm141, %vm145
    %v147 = vsel %vm146, 1, 0
    %v148 = vcvt.s32.f32 %v147
    %v150 = vsel %vm59, %v148, 0
    %152 = vmatprep.subr.mxu0 0.0
    %153 = vmatpush1.msra.mxu0 %v43
    %154 = vmatprep.subr.mxu0 0.0
    %155 = vmatpush1.msra.mxu0 %v44
    %156 = vmatprep.subr.mxu0 0.0
    %157 = vmatpush1.msra.mxu0 0.0
    %158 = vmatprep.subr.mxu0 0.0
    %159 = vmatpush1.msra.mxu0 0.0
    %160 = vmatprep.subr.mxu0 0.0
    %161 = vmatpush1.msra.mxu0 0.0
    %162 = vmatprep.subr.mxu0 0.0
    %163 = vmatpush1.msra.mxu0 0.0
    %164 = vmatprep.subr.mxu0 0.0
    %165 = vmatpush1.msra.mxu0 0.0
    %166 = vmatprep.subr.mxu0 0.0
    %167 = vmatpush1.msra.mxu0 0.0
    %168 = vmatprep.subr.mxu0 0.0
    %169 = vmatpush1.msra.mxu0 0.0
    %170 = vmatprep.subr.mxu0 0.0
    %171 = vmatpush1.msra.mxu0 0.0
    %172 = vmatprep.subr.mxu0 0.0
    %173 = vmatpush1.msra.mxu0 0.0
    %174 = vmatprep.subr.mxu0 0.0
    %175 = vmatpush1.msra.mxu0 0.0
    %176 = vmatprep.subr.mxu0 0.0
    %177 = vmatpush1.msra.mxu0 0.0
    %178 = vmatprep.subr.mxu0 0.0
    %179 = vmatpush1.msra.mxu0 0.0
    %180 = vmatprep.subr.mxu0 0.0
    %181 = vmatpush1.msra.mxu0 0.0
    %182 = vmatprep.subr.mxu0 0.0
    %183 = vmatpush1.msra.mxu0 0.0
    %184 = vmatprep.subr.mxu0 0.0
    %185 = vmatpush1.msra.mxu0 0.0
    %186 = vmatprep.subr.mxu0 0.0
    %187 = vmatpush1.msra.mxu0 0.0
    %188 = vmatprep.subr.mxu0 0.0
    %189 = vmatpush1.msra.mxu0 0.0
    %190 = vmatprep.subr.mxu0 0.0
    %191 = vmatpush1.msra.mxu0 0.0
    %192 = vmatprep.subr.mxu0 0.0
    %193 = vmatpush1.msra.mxu0 0.0
    %194 = vmatprep.subr.mxu0 0.0
    %195 = vmatpush1.msra.mxu0 0.0
    %196 = vmatprep.subr.mxu0 0.0
    %197 = vmatpush1.msra.mxu0 0.0
    %198 = vmatprep.subr.mxu0 0.0
    %199 = vmatpush1.msra.mxu0 0.0
    %200 = vmatprep.subr.mxu0 0.0
    %201 = vmatpush1.msra.mxu0 0.0
    %202 = vmatprep.subr.mxu0 0.0
    %203 = vmatpush1.msra.mxu0 0.0
    %204 = vmatprep.subr.mxu0 0.0
    %205 = vmatpush1.msra.mxu0 0.0
    %206 = vmatprep.subr.mxu0 0.0
    %207 = vmatpush1.msra.mxu0 0.0
    %208 = vmatprep.subr.mxu0 0.0
    %209 = vmatpush1.msra.mxu0 0.0
    %210 = vmatprep.subr.mxu0 0.0
    %211 = vmatpush1.msra.mxu0 0.0
    %212 = vmatprep.subr.mxu0 0.0
    %213 = vmatpush1.msra.mxu0 0.0
    %214 = vmatprep.subr.mxu0 0.0
    %215 = vmatpush1.msra.mxu0 0.0
    %216 = vmatprep.mubr.f32.mxu0 0.0
    %217 = vmatmul.mubr.f32.gmra.mrb[0].mxu0 %v150
    %v218 = vpop.f32.mrb[0].mxu0
    %v219 = vadd.f32 0.0, %v218
    %v220 = vpop.f32.mrb[0].mxu0
    %221 = vdwg.mxu0
    %223 = vrot.lane.b32.xlu0 %v219, 96
    %v224 = vpop.permute.xlu0 %223
    %v226 = vmul.f32 %v219, %v224
    %227 = vset.pattern.permute.xlu0 2
    %228 = vperm.xlu0 %227, %v41
    %v229 = vpop.permute.xlu0 %228
    %vm230 = vcmp.eq.s32.totalorder %v46, %v229
    %231 = vset.pattern.permute.xlu0 2
    %232 = vperm.xlu0 %231, %v47
    %v233 = vpop.permute.xlu0 %232
    %vm234 = vcmp.eq.s32.totalorder %v46, %v233
    %vm235 = vmor %vm230, %vm234
    %v236 = vsel %vm235, 1, 0
    %v237 = vcvt.s32.f32 %v236
    %v239 = vsel %vm59, %v237, 0
    %241 = vmatprep.subr.mxu0 0.0
    %242 = vmatpush1.msra.mxu0 %v43
    %243 = vmatprep.subr.mxu0 0.0
    %244 = vmatpush1.msra.mxu0 %v44
    %245 = vmatprep.subr.mxu0 0.0
    %246 = vmatpush1.msra.mxu0 0.0
    %247 = vmatprep.subr.mxu0 0.0
    %248 = vmatpush1.msra.mxu0 0.0
    %249 = vmatprep.subr.mxu0 0.0
    %250 = vmatpush1.msra.mxu0 0.0
    %251 = vmatprep.subr.mxu0 0.0
    %252 = vmatpush1.msra.mxu0 0.0
    %253 = vmatprep.subr.mxu0 0.0
    %254 = vmatpush1.msra.mxu0 0.0
    %255 = vmatprep.subr.mxu0 0.0
    %256 = vmatpush1.msra.mxu0 0.0
    %257 = vmatprep.subr.mxu0 0.0
    %258 = vmatpush1.msra.mxu0 0.0
    %259 = vmatprep.subr.mxu0 0.0
    %260 = vmatpush1.msra.mxu0 0.0
    %261 = vmatprep.subr.mxu0 0.0
    %262 = vmatpush1.msra.mxu0 0.0
    %263 = vmatprep.subr.mxu0 0.0
    %264 = vmatpush1.msra.mxu0 0.0
    %265 = vmatprep.subr.mxu0 0.0
    %266 = vmatpush1.msra.mxu0 0.0
    %267 = vmatprep.subr.mxu0 0.0
    %268 = vmatpush1.msra.mxu0 0.0
    %269 = vmatprep.subr.mxu0 0.0
    %270 = vmatpush1.msra.mxu0 0.0
    %271 = vmatprep.subr.mxu0 0.0
    %272 = vmatpush1.msra.mxu0 0.0
    %273 = vmatprep.subr.mxu0 0.0
    %274 = vmatpush1.msra.mxu0 0.0
    %275 = vmatprep.subr.mxu0 0.0
    %276 = vmatpush1.msra.mxu0 0.0
    %277 = vmatprep.subr.mxu0 0.0
    %278 = vmatpush1.msra.mxu0 0.0
    %279 = vmatprep.subr.mxu0 0.0
    %280 = vmatpush1.msra.mxu0 0.0
    %281 = vmatprep.subr.mxu0 0.0
    %282 = vmatpush1.msra.mxu0 0.0
    %283 = vmatprep.subr.mxu0 0.0
    %284 = vmatpush1.msra.mxu0 0.0
    %285 = vmatprep.subr.mxu0 0.0
    %286 = vmatpush1.msra.mxu0 0.0
    %287 = vmatprep.subr.mxu0 0.0
    %288 = vmatpush1.msra.mxu0 0.0
    %289 = vmatprep.subr.mxu0 0.0
    %290 = vmatpush1.msra.mxu0 0.0
    %291 = vmatprep.subr.mxu0 0.0
    %292 = vmatpush1.msra.mxu0 0.0
    %293 = vmatprep.subr.mxu0 0.0
    %294 = vmatpush1.msra.mxu0 0.0
    %295 = vmatprep.subr.mxu0 0.0
    %296 = vmatpush1.msra.mxu0 0.0
    %297 = vmatprep.subr.mxu0 0.0
    %298 = vmatpush1.msra.mxu0 0.0
    %299 = vmatprep.subr.mxu0 0.0
    %300 = vmatpush1.msra.mxu0 0.0
    %301 = vmatprep.subr.mxu0 0.0
    %302 = vmatpush1.msra.mxu0 0.0
    %303 = vmatprep.subr.mxu0 0.0
    %304 = vmatpush1.msra.mxu0 0.0
    %305 = vmatprep.mubr.f32.mxu0 0.0
    %306 = vmatmul.mubr.f32.gmra.mrb[0].mxu0 %v239
    %v307 = vpop.f32.mrb[0].mxu0
    %v308 = vadd.f32 0.0, %v307
    %v309 = vpop.f32.mrb[0].mxu0
    %310 = vdwg.mxu0
    %312 = vrot.lane.b32.xlu0 %v308, 96
    %v313 = vpop.permute.xlu0 %312
    %v315 = vmul.f32 %v308, %v313
    %316 = vset.pattern.permute.xlu0 3
    %317 = vperm.xlu0 %316, %v41
    %v318 = vpop.permute.xlu0 %317
    %vm319 = vcmp.eq.s32.totalorder %v46, %v318
    %320 = vset.pattern.permute.xlu0 3
    %321 = vperm.xlu0 %320, %v47
    %v322 = vpop.permute.xlu0 %321
    %vm323 = vcmp.eq.s32.totalorder %v46, %v322
    %vm324 = vmor %vm319, %vm323
    %v325 = vsel %vm324, 1, 0
    %v326 = vcvt.s32.f32 %v325
    %v328 = vsel %vm59, %v326, 0
    %330 = vmatprep.subr.mxu0 0.0
    %331 = vmatpush1.msra.mxu0 %v43
    %332 = vmatprep.subr.mxu0 0.0
    %333 = vmatpush1.msra.mxu0 %v44
    %334 = vmatprep.subr.mxu0 0.0
    %335 = vmatpush1.msra.mxu0 0.0
    %336 = vmatprep.subr.mxu0 0.0
    %337 = vmatpush1.msra.mxu0 0.0
    %338 = vmatprep.subr.mxu0 0.0
    %339 = vmatpush1.msra.mxu0 0.0
    %340 = vmatprep.subr.mxu0 0.0
    %341 = vmatpush1.msra.mxu0 0.0
    %342 = vmatprep.subr.mxu0 0.0
    %343 = vmatpush1.msra.mxu0 0.0
    %344 = vmatprep.subr.mxu0 0.0
    %345 = vmatpush1.msra.mxu0 0.0
    %346 = vmatprep.subr.mxu0 0.0
    %347 = vmatpush1.msra.mxu0 0.0
    %348 = vmatprep.subr.mxu0 0.0
    %349 = vmatpush1.msra.mxu0 0.0
    %350 = vmatprep.subr.mxu0 0.0
    %351 = vmatpush1.msra.mxu0 0.0
    %352 = vmatprep.subr.mxu0 0.0
    %353 = vmatpush1.msra.mxu0 0.0
    %354 = vmatprep.subr.mxu0 0.0
    %355 = vmatpush1.msra.mxu0 0.0
    %356 = vmatprep.subr.mxu0 0.0
    %357 = vmatpush1.msra.mxu0 0.0
    %358 = vmatprep.subr.mxu0 0.0
    %359 = vmatpush1.msra.mxu0 0.0
    %360 = vmatprep.subr.mxu0 0.0
    %361 = vmatpush1.msra.mxu0 0.0
    %362 = vmatprep.subr.mxu0 0.0
    %363 = vmatpush1.msra.mxu0 0.0
    %364 = vmatprep.subr.mxu0 0.0
    %365 = vmatpush1.msra.mxu0 0.0
    %366 = vmatprep.subr.mxu0 0.0
    %367 = vmatpush1.msra.mxu0 0.0
    %368 = vmatprep.subr.mxu0 0.0
    %369 = vmatpush1.msra.mxu0 0.0
    %370 = vmatprep.subr.mxu0 0.0
    %371 = vmatpush1.msra.mxu0 0.0
    %372 = vmatprep.subr.mxu0 0.0
    %373 = vmatpush1.msra.mxu0 0.0
    %374 = vmatprep.subr.mxu0 0.0
    %375 = vmatpush1.msra.mxu0 0.0
    %376 = vmatprep.subr.mxu0 0.0
    %377 = vmatpush1.msra.mxu0 0.0
    %378 = vmatprep.subr.mxu0 0.0
    %379 = vmatpush1.msra.mxu0 0.0
    %380 = vmatprep.subr.mxu0 0.0
    %381 = vmatpush1.msra.mxu0 0.0
    %382 = vmatprep.subr.mxu0 0.0
    %383 = vmatpush1.msra.mxu0 0.0
    %384 = vmatprep.subr.mxu0 0.0
    %385 = vmatpush1.msra.mxu0 0.0
    %386 = vmatprep.subr.mxu0 0.0
    %387 = vmatpush1.msra.mxu0 0.0
    %388 = vmatprep.subr.mxu0 0.0
    %389 = vmatpush1.msra.mxu0 0.0
    %390 = vmatprep.subr.mxu0 0.0
    %391 = vmatpush1.msra.mxu0 0.0
    %392 = vmatprep.subr.mxu0 0.0
    %393 = vmatpush1.msra.mxu0 0.0
    %394 = vmatprep.mubr.f32.mxu0 0.0
    %395 = vmatmul.mubr.f32.gmra.mrb[0].mxu0 %v328
    %v396 = vpop.f32.mrb[0].mxu0
    %v397 = vadd.f32 0.0, %v396
    %v398 = vpop.f32.mrb[0].mxu0
    %399 = vdwg.mxu0
    %401 = vrot.lane.b32.xlu0 %v397, 96
    %v402 = vpop.permute.xlu0 %401
    %v404 = vmul.f32 %v397, %v402
    %406 = vrot.lane.b32.xlu0 %v226, 32
    %v407 = vpop.permute.xlu0 %406
    %410 = vrot.lane.b32.xlu0 %v315, 64
    %v411 = vpop.permute.xlu0 %410
    %414 = vrot.lane.b32.xlu0 %v404, 96
    %v415 = vpop.permute.xlu0 %414
    %vm417 = vcmask 261120
    %v418 = vsel %vm417, %v137, %v407
    %vm419 = vcmask 523264
    %v420 = vsel %vm419, %v418, %v411
    %vm421 = vcmask 785408
    %v422 = vsel %vm421, %v420, %v415
    %423 = vst [vmem:[#allocation7] sm:$0xff] %v422
    // Predicated region
    $region18: #{tpu_custom_call.1} parent=1 // pred_check
      _
    $region19: #{tpu_custom_call.1} parent=1 // pred_check_branch
      %425 = sbr.rel (0) target = $region21
    $region20: #{tpu_custom_call.1} parent=1 // pred_region
      %s427 = ssub.s32 128, 64
      %428 = vsyncadd [#allocation4], %s427
      %s429 = sshll.u32 [#allocation7], 4
      %s430 = int_to_ptr.vmem [resolvable:$true] %s429
      %435 = dma.vmem_to_hbm [thread:$0]  %s430, 64, %s2, [#allocation4], 64, 64, 4
    $region21: #{tpu_custom_call.1} parent=1 // pred_fallthru
      _
    // Predicated region
    $region22: #{tpu_custom_call.1} parent=1 // pred_check
      _
    $region23: #{tpu_custom_call.1} parent=1 // pred_check_branch
      %437 = sbr.rel (0) target = $region25
    $region24: #{tpu_custom_call.1} parent=1 // pred_region
      %438 = dma.done [#allocation4], 128
    $region25: #{tpu_custom_call.1} parent=1 // pred_fallthru
      _
    %439 = vsyncpa [#allocation3], 1
    %440 = vsyncpa [#allocation6], 1
    %441 = vsyncpa [#allocation4], 1

// kernel: tpu_custom_call.1
$region0: #{tpu_custom_call.1}
  #allocation0 [shape = 'u32[]', space=smem, size = 0x4, offset = 0x4, fixed_abs, tag = 'smem constant byte address 0x4 - core index']
  #allocation1 [shape = 'u32[144,128]{1,0:T(1,128)}', space=vmem, size = 0x12000, scoped, tag = 'internal scratch']
  %s0 = inlined_call_operand.hbm [shape: s32[4,4], index: 0, kind: input, shape index: {}]
  %s1 = inlined_call_operand.hbm [shape: f32[16,64], index: 1, kind: input, shape index: {}]
  %s2 = inlined_call_operand.hbm [shape: f32[4,128], index: 2, kind: output, shape index: {}]
  %s3 = sld [smem:[#allocation0]]
  $region26: #{tpu_custom_call.1} parent=0
    _
  %s5 = ssub.s32 1, %s3
  %s6 = scalar_select 0, %s5, %s3
  $region1: #{tpu_custom_call.1} parent=0
    #allocation2 [shape = 'u8[4096]{0}', space=vmem, size = 0x1000, scoped, tag = 'input window, operand 0, single buffered']
    #allocation3 [shape = 's32[1]{0}', space=sflag, size = 0x4, scoped, tag = 'scoped memory for tpu_custom_call.1']
    #allocation4 [shape = 's32[1]{0}', space=sflag, size = 0x4, scoped, tag = 'scoped memory for tpu_custom_call.1']
    #allocation5 [shape = 'u8[8192]{0}', space=vmem, size = 0x2000, scoped, tag = 'input window, operand 1, single buffered']
    #allocation6 [shape = 's32[1]{0}', space=sflag, size = 0x4, scoped, tag = 'scoped memory for tpu_custom_call.1']
    #allocation7 [shape = 'u8[4096]{0}', space=vmem, size = 0x1000, scoped, tag = 'output window, operand 0, single buffered']
    %7 = vsyncpa [#allocation3], 0
    %8 = vsyncpa [#allocation6], 0
    %9 = vsyncpa [#allocation4], 0
    // Predicated region
    $region2: #{tpu_custom_call.1} parent=1 // pred_check
      _
    $region3: #{tpu_custom_call.1} parent=1 // pred_check_branch
      %11 = sbr.rel (0) target = $region5
    $region4: #{tpu_custom_call.1} parent=1 // pred_region
      %s13 = ssub.s32 128, 64
      %14 = vsyncadd [#allocation3], %s13
      %s15 = sshll.u32 [#allocation2], 4
      %s16 = int_to_ptr.vmem [resolvable:$true] %s15
      %21 = dma.hbm_to_vmem [thread:$0]  %s0, 64, %s16, [#allocation3], 64, 64, 4
    $region5: #{tpu_custom_call.1} parent=1 // pred_fallthru
      _
    // Predicated region
    $region6: #{tpu_custom_call.1} parent=1 // pred_check
      _
    $region7: #{tpu_custom_call.1} parent=1 // pred_check_branch
      %23 = sbr.rel (0) target = $region9
    $region8: #{tpu_custom_call.1} parent=1 // pred_region
      %s25 = ssub.s32 256, 256
      %26 = vsyncadd [#allocation6], %s25
      %s27 = sshll.u32 [#allocation5], 4
      %s28 = int_to_ptr.vmem [resolvable:$true] %s27
      %33 = dma.hbm_to_vmem [thread:$0]  %s1, 256, %s28, [#allocation6], 128, 128, 8
    $region9: #{tpu_custom_call.1} parent=1 // pred_fallthru
      _
    // Predicated region
    $region10: #{tpu_custom_call.1} parent=1 // pred_check
      _
    $region11: #{tpu_custom_call.1} parent=1 // pred_check_branch
      %35 = sbr.rel (0) target = $region13
    $region12: #{tpu_custom_call.1} parent=1 // pred_region
      %36 = dma.done [#allocation3], 128
    $region13: #{tpu_custom_call.1} parent=1 // pred_fallthru
      _
    // Predicated region
    $region14: #{tpu_custom_call.1} parent=1 // pred_check
      _
    $region15: #{tpu_custom_call.1} parent=1 // pred_check_branch
      %38 = sbr.rel (0) target = $region17
    $region16: #{tpu_custom_call.1} parent=1 // pred_region
      %39 = dma.done [#allocation6], 256
    $region17: #{tpu_custom_call.1} parent=1 // pred_fallthru
      _
    %v40 = vld [vmem:[#allocation2] sm:$0xff]
    %v41 = vshra.s32 %v40, 3
    %v42 = vand.u32 %v40, 7
    %v43 = vld [vmem:[#allocation5] sm:$0xff]
    %v44 = vld [vmem:[#allocation5 + $0x8] sm:$0xff]
    %v45 = vlaneseq
    %v46 = vand.u32 %v45, 127
    %v47 = vadd.s32 %v42, 8
    %48 = vset.pattern.permute.xlu0 0
    %49 = vperm.xlu0 %48, %v41
    %v50 = vpop.permute.xlu0 %49
    %vm51 = vcmp.eq.s32.totalorder %v46, %v50
    %52 = vset.pattern.permute.xlu0 0
    %53 = vperm.xlu0 %52, %v47
    %v54 = vpop.permute.xlu0 %53
    %vm55 = vcmp.eq.s32.totalorder %v46, %v54
    %vm56 = vmor %vm51, %vm55
    %v57 = vsel %vm56, 1, 0
    %v58 = vcvt.s32.f32 %v57
    %vm59 = vcmask 130048
    %v61 = vsel %vm59, %v58, 0
    %63 = vmatprep.subr.mxu0 0.0
    %64 = vmatpush1.msra.mxu0 %v43
    %65 = vmatprep.subr.mxu0 0.0
    %66 = vmatpush1.msra.mxu0 %v44
    %67 = vmatprep.subr.mxu0 0.0
    %68 = vmatpush1.msra.mxu0 0.0
    %69 = vmatprep.subr.mxu0 0.0
    %70 = vmatpush1.msra.mxu0 0.0
    %71 = vmatprep.subr.mxu0 0.0
    %72 = vmatpush1.msra.mxu0 0.0
    %73 = vmatprep.subr.mxu0 0.0
    %74 = vmatpush1.msra.mxu0 0.0
    %75 = vmatprep.subr.mxu0 0.0
    %76 = vmatpush1.msra.mxu0 0.0
    %77 = vmatprep.subr.mxu0 0.0
    %78 = vmatpush1.msra.mxu0 0.0
    %79 = vmatprep.subr.mxu0 0.0
    %80 = vmatpush1.msra.mxu0 0.0
    %81 = vmatprep.subr.mxu0 0.0
    %82 = vmatpush1.msra.mxu0 0.0
    %83 = vmatprep.subr.mxu0 0.0
    %84 = vmatpush1.msra.mxu0 0.0
    %85 = vmatprep.subr.mxu0 0.0
    %86 = vmatpush1.msra.mxu0 0.0
    %87 = vmatprep.subr.mxu0 0.0
    %88 = vmatpush1.msra.mxu0 0.0
    %89 = vmatprep.subr.mxu0 0.0
    %90 = vmatpush1.msra.mxu0 0.0
    %91 = vmatprep.subr.mxu0 0.0
    %92 = vmatpush1.msra.mxu0 0.0
    %93 = vmatprep.subr.mxu0 0.0
    %94 = vmatpush1.msra.mxu0 0.0
    %95 = vmatprep.subr.mxu0 0.0
    %96 = vmatpush1.msra.mxu0 0.0
    %97 = vmatprep.subr.mxu0 0.0
    %98 = vmatpush1.msra.mxu0 0.0
    %99 = vmatprep.subr.mxu0 0.0
    %100 = vmatpush1.msra.mxu0 0.0
    %101 = vmatprep.subr.mxu0 0.0
    %102 = vmatpush1.msra.mxu0 0.0
    %103 = vmatprep.subr.mxu0 0.0
    %104 = vmatpush1.msra.mxu0 0.0
    %105 = vmatprep.subr.mxu0 0.0
    %106 = vmatpush1.msra.mxu0 0.0
    %107 = vmatprep.subr.mxu0 0.0
    %108 = vmatpush1.msra.mxu0 0.0
    %109 = vmatprep.subr.mxu0 0.0
    %110 = vmatpush1.msra.mxu0 0.0
    %111 = vmatprep.subr.mxu0 0.0
    %112 = vmatpush1.msra.mxu0 0.0
    %113 = vmatprep.subr.mxu0 0.0
    %114 = vmatpush1.msra.mxu0 0.0
    %115 = vmatprep.subr.mxu0 0.0
    %116 = vmatpush1.msra.mxu0 0.0
    %117 = vmatprep.subr.mxu0 0.0
    %118 = vmatpush1.msra.mxu0 0.0
    %119 = vmatprep.subr.mxu0 0.0
    %120 = vmatpush1.msra.mxu0 0.0
    %121 = vmatprep.subr.mxu0 0.0
    %122 = vmatpush1.msra.mxu0 0.0
    %123 = vmatprep.subr.mxu0 0.0
    %124 = vmatpush1.msra.mxu0 0.0
    %125 = vmatprep.subr.mxu0 0.0
    %126 = vmatpush1.msra.mxu0 0.0
    %127 = vmatprep.mubr.f32.mxu0 0.0
    %128 = vmatmul.mubr.f32.gmra.mrb[0].mxu0 %v61
    %v129 = vpop.f32.mrb[0].mxu0
    %v130 = vadd.f32 0.0, %v129
    %v131 = vpop.f32.mrb[0].mxu0
    %132 = vdwg.mxu0
    %134 = vrot.lane.b32.xlu0 %v130, 96
    %v135 = vpop.permute.xlu0 %134
    %v137 = vmul.f32 %v130, %v135
    %138 = vset.pattern.permute.xlu0 1
    %139 = vperm.xlu0 %138, %v41
    %v140 = vpop.permute.xlu0 %139
    %vm141 = vcmp.eq.s32.totalorder %v46, %v140
    %142 = vset.pattern.permute.xlu0 1
    %143 = vperm.xlu0 %142, %v47
    %v144 = vpop.permute.xlu0 %143
    %vm145 = vcmp.eq.s32.totalorder %v46, %v144
    %vm146 = vmor %vm141, %vm145
    %v147 = vsel %vm146, 1, 0
    %v148 = vcvt.s32.f32 %v147
    %v150 = vsel %vm59, %v148, 0
    %152 = vmatprep.subr.mxu0 0.0
    %153 = vmatpush1.msra.mxu0 %v43
    %154 = vmatprep.subr.mxu0 0.0
    %155 = vmatpush1.msra.mxu0 %v44
    %156 = vmatprep.subr.mxu0 0.0
    %157 = vmatpush1.msra.mxu0 0.0
    %158 = vmatprep.subr.mxu0 0.0
    %159 = vmatpush1.msra.mxu0 0.0
    %160 = vmatprep.subr.mxu0 0.0
    %161 = vmatpush1.msra.mxu0 0.0
    %162 = vmatprep.subr.mxu0 0.0
    %163 = vmatpush1.msra.mxu0 0.0
    %164 = vmatprep.subr.mxu0 0.0
    %165 = vmatpush1.msra.mxu0 0.0
    %166 = vmatprep.subr.mxu0 0.0
    %167 = vmatpush1.msra.mxu0 0.0
    %168 = vmatprep.subr.mxu0 0.0
    %169 = vmatpush1.msra.mxu0 0.0
    %170 = vmatprep.subr.mxu0 0.0
    %171 = vmatpush1.msra.mxu0 0.0
    %172 = vmatprep.subr.mxu0 0.0
    %173 = vmatpush1.msra.mxu0 0.0
    %174 = vmatprep.subr.mxu0 0.0
    %175 = vmatpush1.msra.mxu0 0.0
    %176 = vmatprep.subr.mxu0 0.0
    %177 = vmatpush1.msra.mxu0 0.0
    %178 = vmatprep.subr.mxu0 0.0
    %179 = vmatpush1.msra.mxu0 0.0
    %180 = vmatprep.subr.mxu0 0.0
    %181 = vmatpush1.msra.mxu0 0.0
    %182 = vmatprep.subr.mxu0 0.0
    %183 = vmatpush1.msra.mxu0 0.0
    %184 = vmatprep.subr.mxu0 0.0
    %185 = vmatpush1.msra.mxu0 0.0
    %186 = vmatprep.subr.mxu0 0.0
    %187 = vmatpush1.msra.mxu0 0.0
    %188 = vmatprep.subr.mxu0 0.0
    %189 = vmatpush1.msra.mxu0 0.0
    %190 = vmatprep.subr.mxu0 0.0
    %191 = vmatpush1.msra.mxu0 0.0
    %192 = vmatprep.subr.mxu0 0.0
    %193 = vmatpush1.msra.mxu0 0.0
    %194 = vmatprep.subr.mxu0 0.0
    %195 = vmatpush1.msra.mxu0 0.0
    %196 = vmatprep.subr.mxu0 0.0
    %197 = vmatpush1.msra.mxu0 0.0
    %198 = vmatprep.subr.mxu0 0.0
    %199 = vmatpush1.msra.mxu0 0.0
    %200 = vmatprep.subr.mxu0 0.0
    %201 = vmatpush1.msra.mxu0 0.0
    %202 = vmatprep.subr.mxu0 0.0
    %203 = vmatpush1.msra.mxu0 0.0
    %204 = vmatprep.subr.mxu0 0.0
    %205 = vmatpush1.msra.mxu0 0.0
    %206 = vmatprep.subr.mxu0 0.0
    %207 = vmatpush1.msra.mxu0 0.0
    %208 = vmatprep.subr.mxu0 0.0
    %209 = vmatpush1.msra.mxu0 0.0
    %210 = vmatprep.subr.mxu0 0.0
    %211 = vmatpush1.msra.mxu0 0.0
    %212 = vmatprep.subr.mxu0 0.0
    %213 = vmatpush1.msra.mxu0 0.0
    %214 = vmatprep.subr.mxu0 0.0
    %215 = vmatpush1.msra.mxu0 0.0
    %216 = vmatprep.mubr.f32.mxu0 0.0
    %217 = vmatmul.mubr.f32.gmra.mrb[0].mxu0 %v150
    %v218 = vpop.f32.mrb[0].mxu0
    %v219 = vadd.f32 0.0, %v218
    %v220 = vpop.f32.mrb[0].mxu0
    %221 = vdwg.mxu0
    %223 = vrot.lane.b32.xlu0 %v219, 96
    %v224 = vpop.permute.xlu0 %223
    %v226 = vmul.f32 %v219, %v224
    %227 = vset.pattern.permute.xlu0 2
    %228 = vperm.xlu0 %227, %v41
    %v229 = vpop.permute.xlu0 %228
    %vm230 = vcmp.eq.s32.totalorder %v46, %v229
    %231 = vset.pattern.permute.xlu0 2
    %232 = vperm.xlu0 %231, %v47
    %v233 = vpop.permute.xlu0 %232
    %vm234 = vcmp.eq.s32.totalorder %v46, %v233
    %vm235 = vmor %vm230, %vm234
    %v236 = vsel %vm235, 1, 0
    %v237 = vcvt.s32.f32 %v236
    %v239 = vsel %vm59, %v237, 0
    %241 = vmatprep.subr.mxu0 0.0
    %242 = vmatpush1.msra.mxu0 %v43
    %243 = vmatprep.subr.mxu0 0.0
    %244 = vmatpush1.msra.mxu0 %v44
    %245 = vmatprep.subr.mxu0 0.0
    %246 = vmatpush1.msra.mxu0 0.0
    %247 = vmatprep.subr.mxu0 0.0
    %248 = vmatpush1.msra.mxu0 0.0
    %249 = vmatprep.subr.mxu0 0.0
    %250 = vmatpush1.msra.mxu0 0.0
    %251 = vmatprep.subr.mxu0 0.0
    %252 = vmatpush1.msra.mxu0 0.0
    %253 = vmatprep.subr.mxu0 0.0
    %254 = vmatpush1.msra.mxu0 0.0
    %255 = vmatprep.subr.mxu0 0.0
    %256 = vmatpush1.msra.mxu0 0.0
    %257 = vmatprep.subr.mxu0 0.0
    %258 = vmatpush1.msra.mxu0 0.0
    %259 = vmatprep.subr.mxu0 0.0
    %260 = vmatpush1.msra.mxu0 0.0
    %261 = vmatprep.subr.mxu0 0.0
    %262 = vmatpush1.msra.mxu0 0.0
    %263 = vmatprep.subr.mxu0 0.0
    %264 = vmatpush1.msra.mxu0 0.0
    %265 = vmatprep.subr.mxu0 0.0
    %266 = vmatpush1.msra.mxu0 0.0
    %267 = vmatprep.subr.mxu0 0.0
    %268 = vmatpush1.msra.mxu0 0.0
    %269 = vmatprep.subr.mxu0 0.0
    %270 = vmatpush1.msra.mxu0 0.0
    %271 = vmatprep.subr.mxu0 0.0
    %272 = vmatpush1.msra.mxu0 0.0
    %273 = vmatprep.subr.mxu0 0.0
    %274 = vmatpush1.msra.mxu0 0.0
    %275 = vmatprep.subr.mxu0 0.0
    %276 = vmatpush1.msra.mxu0 0.0
    %277 = vmatprep.subr.mxu0 0.0
    %278 = vmatpush1.msra.mxu0 0.0
    %279 = vmatprep.subr.mxu0 0.0
    %280 = vmatpush1.msra.mxu0 0.0
    %281 = vmatprep.subr.mxu0 0.0
    %282 = vmatpush1.msra.mxu0 0.0
    %283 = vmatprep.subr.mxu0 0.0
    %284 = vmatpush1.msra.mxu0 0.0
    %285 = vmatprep.subr.mxu0 0.0
    %286 = vmatpush1.msra.mxu0 0.0
    %287 = vmatprep.subr.mxu0 0.0
    %288 = vmatpush1.msra.mxu0 0.0
    %289 = vmatprep.subr.mxu0 0.0
    %290 = vmatpush1.msra.mxu0 0.0
    %291 = vmatprep.subr.mxu0 0.0
    %292 = vmatpush1.msra.mxu0 0.0
    %293 = vmatprep.subr.mxu0 0.0
    %294 = vmatpush1.msra.mxu0 0.0
    %295 = vmatprep.subr.mxu0 0.0
    %296 = vmatpush1.msra.mxu0 0.0
    %297 = vmatprep.subr.mxu0 0.0
    %298 = vmatpush1.msra.mxu0 0.0
    %299 = vmatprep.subr.mxu0 0.0
    %300 = vmatpush1.msra.mxu0 0.0
    %301 = vmatprep.subr.mxu0 0.0
    %302 = vmatpush1.msra.mxu0 0.0
    %303 = vmatprep.subr.mxu0 0.0
    %304 = vmatpush1.msra.mxu0 0.0
    %305 = vmatprep.mubr.f32.mxu0 0.0
    %306 = vmatmul.mubr.f32.gmra.mrb[0].mxu0 %v239
    %v307 = vpop.f32.mrb[0].mxu0
    %v308 = vadd.f32 0.0, %v307
    %v309 = vpop.f32.mrb[0].mxu0
    %310 = vdwg.mxu0
    %312 = vrot.lane.b32.xlu0 %v308, 96
    %v313 = vpop.permute.xlu0 %312
    %v315 = vmul.f32 %v308, %v313
    %316 = vset.pattern.permute.xlu0 3
    %317 = vperm.xlu0 %316, %v41
    %v318 = vpop.permute.xlu0 %317
    %vm319 = vcmp.eq.s32.totalorder %v46, %v318
    %320 = vset.pattern.permute.xlu0 3
    %321 = vperm.xlu0 %320, %v47
    %v322 = vpop.permute.xlu0 %321
    %vm323 = vcmp.eq.s32.totalorder %v46, %v322
    %vm324 = vmor %vm319, %vm323
    %v325 = vsel %vm324, 1, 0
    %v326 = vcvt.s32.f32 %v325
    %v328 = vsel %vm59, %v326, 0
    %330 = vmatprep.subr.mxu0 0.0
    %331 = vmatpush1.msra.mxu0 %v43
    %332 = vmatprep.subr.mxu0 0.0
    %333 = vmatpush1.msra.mxu0 %v44
    %334 = vmatprep.subr.mxu0 0.0
    %335 = vmatpush1.msra.mxu0 0.0
    %336 = vmatprep.subr.mxu0 0.0
    %337 = vmatpush1.msra.mxu0 0.0
    %338 = vmatprep.subr.mxu0 0.0
    %339 = vmatpush1.msra.mxu0 0.0
    %340 = vmatprep.subr.mxu0 0.0
    %341 = vmatpush1.msra.mxu0 0.0
    %342 = vmatprep.subr.mxu0 0.0
    %343 = vmatpush1.msra.mxu0 0.0
    %344 = vmatprep.subr.mxu0 0.0
    %345 = vmatpush1.msra.mxu0 0.0
    %346 = vmatprep.subr.mxu0 0.0
    %347 = vmatpush1.msra.mxu0 0.0
    %348 = vmatprep.subr.mxu0 0.0
    %349 = vmatpush1.msra.mxu0 0.0
    %350 = vmatprep.subr.mxu0 0.0
    %351 = vmatpush1.msra.mxu0 0.0
    %352 = vmatprep.subr.mxu0 0.0
    %353 = vmatpush1.msra.mxu0 0.0
    %354 = vmatprep.subr.mxu0 0.0
    %355 = vmatpush1.msra.mxu0 0.0
    %356 = vmatprep.subr.mxu0 0.0
    %357 = vmatpush1.msra.mxu0 0.0
    %358 = vmatprep.subr.mxu0 0.0
    %359 = vmatpush1.msra.mxu0 0.0
    %360 = vmatprep.subr.mxu0 0.0
    %361 = vmatpush1.msra.mxu0 0.0
    %362 = vmatprep.subr.mxu0 0.0
    %363 = vmatpush1.msra.mxu0 0.0
    %364 = vmatprep.subr.mxu0 0.0
    %365 = vmatpush1.msra.mxu0 0.0
    %366 = vmatprep.subr.mxu0 0.0
    %367 = vmatpush1.msra.mxu0 0.0
    %368 = vmatprep.subr.mxu0 0.0
    %369 = vmatpush1.msra.mxu0 0.0
    %370 = vmatprep.subr.mxu0 0.0
    %371 = vmatpush1.msra.mxu0 0.0
    %372 = vmatprep.subr.mxu0 0.0
    %373 = vmatpush1.msra.mxu0 0.0
    %374 = vmatprep.subr.mxu0 0.0
    %375 = vmatpush1.msra.mxu0 0.0
    %376 = vmatprep.subr.mxu0 0.0
    %377 = vmatpush1.msra.mxu0 0.0
    %378 = vmatprep.subr.mxu0 0.0
    %379 = vmatpush1.msra.mxu0 0.0
    %380 = vmatprep.subr.mxu0 0.0
    %381 = vmatpush1.msra.mxu0 0.0
    %382 = vmatprep.subr.mxu0 0.0
    %383 = vmatpush1.msra.mxu0 0.0
    %384 = vmatprep.subr.mxu0 0.0
    %385 = vmatpush1.msra.mxu0 0.0
    %386 = vmatprep.subr.mxu0 0.0
    %387 = vmatpush1.msra.mxu0 0.0
    %388 = vmatprep.subr.mxu0 0.0
    %389 = vmatpush1.msra.mxu0 0.0
    %390 = vmatprep.subr.mxu0 0.0
    %391 = vmatpush1.msra.mxu0 0.0
    %392 = vmatprep.subr.mxu0 0.0
    %393 = vmatpush1.msra.mxu0 0.0
    %394 = vmatprep.mubr.f32.mxu0 0.0
    %395 = vmatmul.mubr.f32.gmra.mrb[0].mxu0 %v328
    %v396 = vpop.f32.mrb[0].mxu0
    %v397 = vadd.f32 0.0, %v396
    %v398 = vpop.f32.mrb[0].mxu0
    %399 = vdwg.mxu0
    %401 = vrot.lane.b32.xlu0 %v397, 96
    %v402 = vpop.permute.xlu0 %401
    %v404 = vmul.f32 %v397, %v402
    %406 = vrot.lane.b32.xlu0 %v226, 32
    %v407 = vpop.permute.xlu0 %406
    %410 = vrot.lane.b32.xlu0 %v315, 64
    %v411 = vpop.permute.xlu0 %410
    %414 = vrot.lane.b32.xlu0 %v404, 96
    %v415 = vpop.permute.xlu0 %414
    %vm417 = vcmask 261120
    %v418 = vsel %vm417, %v137, %v407
    %vm419 = vcmask 523264
    %v420 = vsel %vm419, %v418, %v411
    %vm421 = vcmask 785408
    %v422 = vsel %vm421, %v420, %v415
    %423 = vst [vmem:[#allocation7] sm:$0xff] %v422
    // Predicated region
    $region18: #{tpu_custom_call.1} parent=1 // pred_check
      _
    $region19: #{tpu_custom_call.1} parent=1 // pred_check_branch
      %425 = sbr.rel (0) target = $region21
    $region20: #{tpu_custom_call.1} parent=1 // pred_region
      %s427 = ssub.s32 128, 64
      %428 = vsyncadd [#allocation4], %s427
      %s429 = sshll.u32 [#allocation7], 4
      %s430 = int_to_ptr.vmem [resolvable:$true] %s429
      %435 = dma.vmem_to_hbm [thread:$0]  %s430, 64, %s2, [#allocation4], 64, 64, 4
    $region21: #{tpu_custom_call.1} parent=1 // pred_fallthru
      _
    // Predicated region
    $region22: #{tpu_custom_call.1} parent=1 // pred_check
      _
    $region23: #{tpu_custom_call.1} parent=1 // pred_check_branch
      %437 = sbr.rel (0) target = $region25
    $region24: #{tpu_custom_call.1} parent=1 // pred_region
      %438 = dma.done [#allocation4], 128
    $region25: #{tpu_custom_call.1} parent=1 // pred_fallthru
      _
    %439 = vsyncpa [#allocation3], 1
    %440 = vsyncpa [#allocation6], 1
    %441 = vsyncpa [#allocation4], 1

</llo_original>
